<compile_context>
chip_gen: v7x
topology: tpu7x:2x2x1
jax: 0.10.0
libtpu: 0.0.40
codegen_flags: <defaults>
</compile_context>

<pallas_src>
import functools

import jax
import jax.numpy as jnp
import numpy as np
from jax import lax
from jax.experimental import pallas as pl
from jax.experimental.pallas import tpu as pltpu


# ------------------------------ Pallas kernel ------------------------------ #
def lstm1d10_kernel(x_ref,       # (S, KE)  bf16: [x_flat | 0.01*t2v | 1 | pad]
                    w_ref,       # (R, 4H)  bf16 weight slab:
                                 #   rows 0:KE        -> W_ext (conv/t2v/bias folded, gate-permuted, i/f/o *0.5)
                                 #   rows KE:KE+H     -> whh_t (gate-permuted, i/f/o *0.5)
                                 #   rows KE+H:KE+2H  -> fc weights duplicated + lane-padded
                                 #   row  KE+2H       -> fc bias duplicated + lane-padded
                    out_ref,     # (S, 4H) f32: [sigmoid(logits) | logits | 0 pad]
                    *, KE, H, O):
    S = x_ref.shape[0]
    G = 4 * H

    w_ext = w_ref[0:KE, :]                       # (KE, 4H) bf16
    whh_t = w_ref[KE:KE + H, :]                  # (H, 4H)  bf16
    fcw2 = w_ref[KE + H:KE + 2 * H, :]           # (H, 4H)  bf16 (lane-padded)
    fcb2 = w_ref[KE + 2 * H:KE + 2 * H + 1, :].astype(jnp.float32)   # (1, 4H)

    # --- hoisted input projection: ONE bf16 MXU matmul (bias folded in) ------
    # gate order along 4H is [i, f, o, g] (host-permuted); i/f/o pre-scaled 0.5.
    gates_x = jnp.dot(x_ref[...], w_ext,
                      preferred_element_type=jnp.float32)            # (S, 4H) f32

    # scale/offset to recover sigmoid(i,f,o)=0.5*tanh(x/2)+0.5 from one tanh
    gcol = lax.broadcasted_iota(jnp.int32, (1, G), 1)
    g_scale = jnp.where(gcol < 3 * H, 0.5, 1.0).astype(jnp.float32)
    g_offset = jnp.where(gcol < 3 * H, 0.5, 0.0).astype(jnp.float32)

    # --- LSTM recurrence: fully unrolled, only h @ whh_t on the serial chain -
    row = lax.broadcasted_iota(jnp.int32, (S, H), 0)
    hseq = jnp.zeros((S, H), jnp.float32)
    h_bf = jnp.zeros((1, H), jnp.bfloat16)
    c = jnp.zeros((1, H), jnp.float32)
    for t in range(S):                                               # S static
        g_lin = gates_x[t:t + 1, :] + jnp.dot(
            h_bf, whh_t, preferred_element_type=jnp.float32)         # (1, 4H)
        act = jnp.tanh(g_lin) * g_scale + g_offset                   # one EUP pass
        i_g = act[:, 0:H]
        f_g = act[:, H:2 * H]
        o_g = act[:, 2 * H:3 * H]
        g_g = act[:, 3 * H:4 * H]
        c = f_g * c + i_g * g_g
        h = o_g * jnp.tanh(c)
        h_bf = h.astype(jnp.bfloat16)
        # register-resident collection of h_t (no VMEM scratch / masked stores)
        hseq = jnp.where(row == t, jnp.broadcast_to(h, (S, H)), hseq)

    # --- fc + sigmoid, single lane-dense (S, 128) output ---------------------
    z = jnp.dot(hseq.astype(jnp.bfloat16), fcw2,
                preferred_element_type=jnp.float32) + fcb2           # (S, 4H)
    col_o = lax.broadcasted_iota(jnp.int32, (S, G), 1)
    out_ref[...] = jnp.where(col_o < O, jax.nn.sigmoid(z), z)


# ------------------------------ host wrapper ------------------------------- #
def lstm_1d_10_forward(inputs, times, params):
    """inputs: (S, C, D) float32 (PyTorch NCL); times: (S, 1) float32."""
    (conv_w, conv_b, t2v_w, t2v_b, wih, whh, bih, bhh, fcw, fcb) = params
    S, C, D = inputs.shape
    H = whh.shape[1]
    O = fcw.shape[0]
    G = 4 * H
    assert 2 * O <= G

    # gate permutation: PyTorch [i, f, g, o] -> [i, f, o, g]
    perm = np.concatenate([np.arange(0, 2 * H),
                           np.arange(3 * H, 4 * H),
                           np.arange(2 * H, 3 * H)])
    wih_t = wih.T[:, perm]                                           # (D, 4H)
    whh_t = whh.T[:, perm]                                           # (H, 4H)
    bias_eff = (bih + bhh)[perm] + conv_b[0] * jnp.sum(wih_t, axis=0)  # (4H,)

    # fold 1x1 conv weight into the input projection
    w_comb = (conv_w[:, None, None] * wih_t[None, :, :]).reshape(C * D, G)

    # sigmoid-via-tanh fold: pre-scale i/f/o (first 3H) gate columns by 0.5
    gscale = jnp.where(jnp.arange(G) < 3 * H, 0.5, 1.0).astype(jnp.float32)
    w_comb = w_comb * gscale
    wih_t_s = wih_t * gscale
    whh_t_s = whh_t * gscale
    bias_eff = bias_eff * gscale

    # Time2Vec hoisted out of the kernel (channel 0 linear, rest sinusoidal)
    lin = times * t2v_w + t2v_b                                      # (S, D)
    t2v = jnp.where(jnp.arange(D)[None, :] == 0, lin, jnp.sin(lin))

    # extended data operand: [x_flat | 0.01*t2v | 1 (bias col) | zero pad]
    KE = ((C * D + D + 1 + 7) // 8) * 8
    x_ext = jnp.zeros((S, KE), jnp.float32)
    x_ext = x_ext.at[:, :C * D].set(inputs.reshape(S, C * D))
    x_ext = x_ext.at[:, C * D:C * D + D].set(0.01 * t2v)
    x_ext = x_ext.at[:, C * D + D].set(1.0)
    x_ext = x_ext.astype(jnp.bfloat16)

    # fc weights duplicated (sigmoid|logits out of one matmul) + lane-padded
    fcw2 = jnp.zeros((H, G), jnp.float32)
    fcw2 = fcw2.at[:, :O].set(fcw.T)
    fcw2 = fcw2.at[:, O:2 * O].set(fcw.T)
    fcb2 = jnp.zeros((G,), jnp.float32)
    fcb2 = fcb2.at[:O].set(fcb)
    fcb2 = fcb2.at[O:2 * O].set(fcb)

    # single bf16 weight slab: [W_ext ; whh_t ; fcw2 ; fcb2 ; zero pad]
    n_rows = KE + 2 * H + 1
    n_rows_pad = ((n_rows + 7) // 8) * 8
    wslab = jnp.zeros((n_rows_pad, G), jnp.float32)
    wslab = wslab.at[:C * D, :].set(w_comb)
    wslab = wslab.at[C * D:C * D + D, :].set(wih_t_s)
    wslab = wslab.at[C * D + D, :].set(bias_eff)
    wslab = wslab.at[KE:KE + H, :].set(whh_t_s)
    wslab = wslab.at[KE + H:KE + 2 * H, :].set(fcw2)
    wslab = wslab.at[KE + 2 * H, :].set(fcb2)
    wslab = wslab.astype(jnp.bfloat16)

    vmem = pl.BlockSpec(memory_space=pltpu.MemorySpace.VMEM)
    kern = functools.partial(lstm1d10_kernel, KE=KE, H=H, O=O)
    out = pl.pallas_call(
        kern,
        out_shape=jax.ShapeDtypeStruct((S, G), jnp.float32),
        in_specs=[vmem, vmem],
        out_specs=vmem,
    )(x_ext, wslab)

    return out[:, :O], out[:, O:2 * O]


# --------------------------- pure-JAX reference ----------------------------- #
def ref_forward(inputs, times, params):
    (conv_w, conv_b, t2v_w, t2v_b, wih, whh, bih, bhh, fcw, fcb) = params
    S, C, D = inputs.shape
    H = whh.shape[1]
    feat = jnp.einsum('scd,c->sd', inputs, conv_w) + conv_b[0]
    lin = times * t2v_w + t2v_b
    col = jnp.arange(D)[None, :]
    t2v = jnp.where(col == 0, lin, jnp.sin(lin))
    xs = feat + 0.01 * t2v
    h = jnp.zeros((H,), jnp.float32)
    c = jnp.zeros((H,), jnp.float32)
    hs = []
    for t in range(S):
        g = xs[t] @ wih.T + bih + h @ whh.T + bhh
        i = jax.nn.sigmoid(g[0 * H:1 * H])
        f = jax.nn.sigmoid(g[1 * H:2 * H])
        gg = jnp.tanh(g[2 * H:3 * H])
        o = jax.nn.sigmoid(g[3 * H:4 * H])
        c = f * c + i * gg
        h = o * jnp.tanh(c)
        hs.append(h)
    hs = jnp.stack(hs)
    logits = hs @ fcw.T + fcb
    return jax.nn.sigmoid(logits), logits


# ------------------------------- parameters -------------------------------- #
def make_params(key, C, D, H, O):
    ks = jax.random.split(key, 10)
    # softconv weight ~ Weibull(scale=1, concentration=3), shape (1, C, 1) -> (C,)
    u = jax.random.uniform(ks[0], (C,), minval=1e-6, maxval=1.0)
    conv_w = (-jnp.log(u)) ** (1.0 / 3.0)
    conv_b = 0.05 * jax.random.normal(ks[1], (1,))
    t2v_w = 0.2 * jax.random.normal(ks[2], (1, D))
    t2v_b = 0.2 * jax.random.normal(ks[3], (1, D))
    s = 1.0 / jnp.sqrt(H)
    wih = jax.random.uniform(ks[4], (4 * H, D), minval=-s, maxval=s)
    whh = jax.random.uniform(ks[5], (4 * H, H), minval=-s, maxval=s)
    bih = jax.random.uniform(ks[6], (4 * H,), minval=-s, maxval=s)
    bhh = jax.random.uniform(ks[7], (4 * H,), minval=-s, maxval=s)
    fcw = jax.random.uniform(ks[8], (O, H), minval=-s, maxval=s)
    fcb = jax.random.uniform(ks[9], (O,), minval=-s, maxval=s)
    return tuple(p.astype(jnp.float32)
                 for p in (conv_w, conv_b, t2v_w, t2v_b,
                           wih, whh, bih, bhh, fcw, fcb))


if __name__ == "__main__":
    # Module config: cnn_dim=4, input_dim=16, hidden_dim=32, output_dim=4,
    # layer_num=1, is_bidirectional=False  ->  self.hidden_dim = 32
    S, C, D, H, O = 8, 4, 16, 32, 4

    key = jax.random.PRNGKey(0)
    k_in, k_t, k_p = jax.random.split(key, 3)
    inputs = jax.random.normal(k_in, (S, C, D), dtype=jnp.float32)   # NCL
    times = jax.random.uniform(k_t, (S, 1), dtype=jnp.float32)
    params = make_params(k_p, C, D, H, O)

    sig, logit = lstm_1d_10_forward(inputs, times, params)
    jax.block_until_ready((sig, logit))

    sig_ref, logit_ref = ref_forward(inputs, times, params)
    # bf16 MXU operands (per perf review) vs. pure-f32 reference: 2e-2 tolerance.
    np.testing.assert_allclose(np.asarray(logit), np.asarray(logit_ref),
                               rtol=2e-2, atol=2e-2)
    np.testing.assert_allclose(np.asarray(sig), np.asarray(sig_ref),
                               rtol=2e-2, atol=2e-2)
    print("KERNEL_OK")
</pallas_src>

<mosaic_0001>
module attributes {stable_mosaic.version = 11 : i64} {
  func.func @lstm1d10_kernel(%arg0: memref<8x88xbf16, #tpu.memory_space<vmem>>, %arg1: memref<160x128xbf16, #tpu.memory_space<vmem>>, %arg2: memref<8x128xf32, #tpu.memory_space<vmem>>) attributes {dimension_semantics = [], scalar_prefetch = 0 : i64, scratch_operands = 0 : i64, tpu.core_type = #tpu.core_type<tc>} {
    %c0 = arith.constant 0 : index
    %c0_0 = arith.constant 0 : index
    %0 = vector.load %arg1[%c0, %c0_0] : memref<160x128xbf16, #tpu.memory_space<vmem>>, vector<88x128xbf16>
    %c88 = arith.constant 88 : index
    %c0_1 = arith.constant 0 : index
    %1 = vector.load %arg1[%c88, %c0_1] : memref<160x128xbf16, #tpu.memory_space<vmem>>, vector<32x128xbf16>
    %c120 = arith.constant 120 : index
    %c0_2 = arith.constant 0 : index
    %2 = vector.load %arg1[%c120, %c0_2] : memref<160x128xbf16, #tpu.memory_space<vmem>>, vector<32x128xbf16>
    %c152 = arith.constant 152 : index
    %c0_3 = arith.constant 0 : index
    %3 = vector.load %arg1[%c152, %c0_3] : memref<160x128xbf16, #tpu.memory_space<vmem>>, vector<1x128xbf16>
    %4 = arith.extf %3 : vector<1x128xbf16> to vector<1x128xf32>
    %c0_4 = arith.constant 0 : index
    %c0_5 = arith.constant 0 : index
    %5 = vector.load %arg0[%c0_4, %c0_5] : memref<8x88xbf16, #tpu.memory_space<vmem>>, vector<8x88xbf16>
    %cst = arith.constant dense<0.000000e+00> : vector<8x128xf32>
    %6 = tpu.matmul %5, %0, %cst {dimension_numbers = #tpu.dot_dimension_numbers<[1], [0], [0], [1], [0, 0, 1, 1], [], []>} : vector<8x88xbf16>, vector<88x128xbf16>, vector<8x128xf32> -> vector<8x128xf32>
    %7 = tpu.iota {dimensions = array<i32: 1>} : vector<1x128xi32>
    %c96_i32 = arith.constant 96 : i32
    %8 = vector.broadcast %c96_i32 : i32 to vector<1x128xi32>
    %9 = arith.cmpi slt, %7, %8 : vector<1x128xi32>
    %cst_6 = arith.constant 5.000000e-01 : f32
    %cst_7 = arith.constant 1.000000e+00 : f32
    %10 = vector.broadcast %cst_6 : f32 to vector<1x128xf32>
    %11 = vector.broadcast %cst_7 : f32 to vector<1x128xf32>
    %12 = arith.select %9, %10, %11 : vector<1x128xi1>, vector<1x128xf32>
    %c96_i32_8 = arith.constant 96 : i32
    %13 = vector.broadcast %c96_i32_8 : i32 to vector<1x128xi32>
    %14 = arith.cmpi slt, %7, %13 : vector<1x128xi32>
    %cst_9 = arith.constant 5.000000e-01 : f32
    %cst_10 = arith.constant 0.000000e+00 : f32
    %15 = vector.broadcast %cst_9 : f32 to vector<1x128xf32>
    %16 = vector.broadcast %cst_10 : f32 to vector<1x128xf32>
    %17 = arith.select %14, %15, %16 : vector<1x128xi1>, vector<1x128xf32>
    %18 = tpu.iota {dimensions = array<i32: 0>} : vector<8x32xi32>
    %cst_11 = arith.constant 0.000000e+00 : f32
    %19 = vector.broadcast %cst_11 : f32 to vector<8x32xf32>
    %cst_12 = arith.constant 0.000000e+00 : bf16
    %20 = vector.broadcast %cst_12 : bf16 to vector<1x32xbf16>
    %cst_13 = arith.constant 0.000000e+00 : f32
    %21 = vector.broadcast %cst_13 : f32 to vector<1x32xf32>
    %22 = vector.extract_strided_slice %6 {offsets = [0, 0], sizes = [1, 128], strides = [1, 1]} : vector<8x128xf32> to vector<1x128xf32>
    %cst_14 = arith.constant dense<0.000000e+00> : vector<1x128xf32>
    %23 = tpu.matmul %20, %1, %cst_14 {dimension_numbers = #tpu.dot_dimension_numbers<[1], [0], [0], [1], [0, 0, 1, 1], [], []>} : vector<1x32xbf16>, vector<32x128xbf16>, vector<1x128xf32> -> vector<1x128xf32>
    %24 = arith.addf %22, %23 : vector<1x128xf32>
    %25 = math.tanh %24 : vector<1x128xf32>
    %26 = arith.mulf %25, %12 : vector<1x128xf32>
    %27 = arith.addf %26, %17 : vector<1x128xf32>
    %28 = vector.extract_strided_slice %27 {offsets = [0, 0], sizes = [1, 32], strides = [1, 1]} : vector<1x128xf32> to vector<1x32xf32>
    %29 = vector.extract_strided_slice %27 {offsets = [0, 32], sizes = [1, 32], strides = [1, 1]} : vector<1x128xf32> to vector<1x32xf32>
    %30 = vector.extract_strided_slice %27 {offsets = [0, 64], sizes = [1, 32], strides = [1, 1]} : vector<1x128xf32> to vector<1x32xf32>
    %31 = vector.extract_strided_slice %27 {offsets = [0, 96], sizes = [1, 32], strides = [1, 1]} : vector<1x128xf32> to vector<1x32xf32>
    %32 = arith.mulf %29, %21 : vector<1x32xf32>
    %33 = arith.mulf %28, %31 : vector<1x32xf32>
    %34 = arith.addf %32, %33 : vector<1x32xf32>
    %35 = math.tanh %34 : vector<1x32xf32>
    %36 = arith.mulf %30, %35 : vector<1x32xf32>
    %37 = arith.truncf %36 : vector<1x32xf32> to vector<1x32xbf16>
    %c0_i32 = arith.constant 0 : i32
    %38 = vector.broadcast %c0_i32 : i32 to vector<8x32xi32>
    %39 = arith.cmpi eq, %18, %38 : vector<8x32xi32>
    %40 = vector.shape_cast %36 : vector<1x32xf32> to vector<1x32xf32>
    %41 = vector.broadcast %40 : vector<1x32xf32> to vector<8x32xf32>
    %42 = arith.select %39, %41, %19 : vector<8x32xi1>, vector<8x32xf32>
    %43 = vector.extract_strided_slice %6 {offsets = [1, 0], sizes = [1, 128], strides = [1, 1]} : vector<8x128xf32> to vector<1x128xf32>
    %cst_15 = arith.constant dense<0.000000e+00> : vector<1x128xf32>
    %44 = tpu.matmul %37, %1, %cst_15 {dimension_numbers = #tpu.dot_dimension_numbers<[1], [0], [0], [1], [0, 0, 1, 1], [], []>} : vector<1x32xbf16>, vector<32x128xbf16>, vector<1x128xf32> -> vector<1x128xf32>
    %45 = arith.addf %43, %44 : vector<1x128xf32>
    %46 = math.tanh %45 : vector<1x128xf32>
    %47 = arith.mulf %46, %12 : vector<1x128xf32>
    %48 = arith.addf %47, %17 : vector<1x128xf32>
    %49 = vector.extract_strided_slice %48 {offsets = [0, 0], sizes = [1, 32], strides = [1, 1]} : vector<1x128xf32> to vector<1x32xf32>
    %50 = vector.extract_strided_slice %48 {offsets = [0, 32], sizes = [1, 32], strides = [1, 1]} : vector<1x128xf32> to vector<1x32xf32>
    %51 = vector.extract_strided_slice %48 {offsets = [0, 64], sizes = [1, 32], strides = [1, 1]} : vector<1x128xf32> to vector<1x32xf32>
    %52 = vector.extract_strided_slice %48 {offsets = [0, 96], sizes = [1, 32], strides = [1, 1]} : vector<1x128xf32> to vector<1x32xf32>
    %53 = arith.mulf %50, %34 : vector<1x32xf32>
    %54 = arith.mulf %49, %52 : vector<1x32xf32>
    %55 = arith.addf %53, %54 : vector<1x32xf32>
    %56 = math.tanh %55 : vector<1x32xf32>
    %57 = arith.mulf %51, %56 : vector<1x32xf32>
    %58 = arith.truncf %57 : vector<1x32xf32> to vector<1x32xbf16>
    %c1_i32 = arith.constant 1 : i32
    %59 = vector.broadcast %c1_i32 : i32 to vector<8x32xi32>
    %60 = arith.cmpi eq, %18, %59 : vector<8x32xi32>
    %61 = vector.shape_cast %57 : vector<1x32xf32> to vector<1x32xf32>
    %62 = vector.broadcast %61 : vector<1x32xf32> to vector<8x32xf32>
    %63 = arith.select %60, %62, %42 : vector<8x32xi1>, vector<8x32xf32>
    %64 = vector.extract_strided_slice %6 {offsets = [2, 0], sizes = [1, 128], strides = [1, 1]} : vector<8x128xf32> to vector<1x128xf32>
    %cst_16 = arith.constant dense<0.000000e+00> : vector<1x128xf32>
    %65 = tpu.matmul %58, %1, %cst_16 {dimension_numbers = #tpu.dot_dimension_numbers<[1], [0], [0], [1], [0, 0, 1, 1], [], []>} : vector<1x32xbf16>, vector<32x128xbf16>, vector<1x128xf32> -> vector<1x128xf32>
    %66 = arith.addf %64, %65 : vector<1x128xf32>
    %67 = math.tanh %66 : vector<1x128xf32>
    %68 = arith.mulf %67, %12 : vector<1x128xf32>
    %69 = arith.addf %68, %17 : vector<1x128xf32>
    %70 = vector.extract_strided_slice %69 {offsets = [0, 0], sizes = [1, 32], strides = [1, 1]} : vector<1x128xf32> to vector<1x32xf32>
    %71 = vector.extract_strided_slice %69 {offsets = [0, 32], sizes = [1, 32], strides = [1, 1]} : vector<1x128xf32> to vector<1x32xf32>
    %72 = vector.extract_strided_slice %69 {offsets = [0, 64], sizes = [1, 32], strides = [1, 1]} : vector<1x128xf32> to vector<1x32xf32>
    %73 = vector.extract_strided_slice %69 {offsets = [0, 96], sizes = [1, 32], strides = [1, 1]} : vector<1x128xf32> to vector<1x32xf32>
    %74 = arith.mulf %71, %55 : vector<1x32xf32>
    %75 = arith.mulf %70, %73 : vector<1x32xf32>
    %76 = arith.addf %74, %75 : vector<1x32xf32>
    %77 = math.tanh %76 : vector<1x32xf32>
    %78 = arith.mulf %72, %77 : vector<1x32xf32>
    %79 = arith.truncf %78 : vector<1x32xf32> to vector<1x32xbf16>
    %c2_i32 = arith.constant 2 : i32
    %80 = vector.broadcast %c2_i32 : i32 to vector<8x32xi32>
    %81 = arith.cmpi eq, %18, %80 : vector<8x32xi32>
    %82 = vector.shape_cast %78 : vector<1x32xf32> to vector<1x32xf32>
    %83 = vector.broadcast %82 : vector<1x32xf32> to vector<8x32xf32>
    %84 = arith.select %81, %83, %63 : vector<8x32xi1>, vector<8x32xf32>
    %85 = vector.extract_strided_slice %6 {offsets = [3, 0], sizes = [1, 128], strides = [1, 1]} : vector<8x128xf32> to vector<1x128xf32>
    %cst_17 = arith.constant dense<0.000000e+00> : vector<1x128xf32>
    %86 = tpu.matmul %79, %1, %cst_17 {dimension_numbers = #tpu.dot_dimension_numbers<[1], [0], [0], [1], [0, 0, 1, 1], [], []>} : vector<1x32xbf16>, vector<32x128xbf16>, vector<1x128xf32> -> vector<1x128xf32>
    %87 = arith.addf %85, %86 : vector<1x128xf32>
    %88 = math.tanh %87 : vector<1x128xf32>
    %89 = arith.mulf %88, %12 : vector<1x128xf32>
    %90 = arith.addf %89, %17 : vector<1x128xf32>
    %91 = vector.extract_strided_slice %90 {offsets = [0, 0], sizes = [1, 32], strides = [1, 1]} : vector<1x128xf32> to vector<1x32xf32>
    %92 = vector.extract_strided_slice %90 {offsets = [0, 32], sizes = [1, 32], strides = [1, 1]} : vector<1x128xf32> to vector<1x32xf32>
    %93 = vector.extract_strided_slice %90 {offsets = [0, 64], sizes = [1, 32], strides = [1, 1]} : vector<1x128xf32> to vector<1x32xf32>
    %94 = vector.extract_strided_slice %90 {offsets = [0, 96], sizes = [1, 32], strides = [1, 1]} : vector<1x128xf32> to vector<1x32xf32>
    %95 = arith.mulf %92, %76 : vector<1x32xf32>
    %96 = arith.mulf %91, %94 : vector<1x32xf32>
    %97 = arith.addf %95, %96 : vector<1x32xf32>
    %98 = math.tanh %97 : vector<1x32xf32>
    %99 = arith.mulf %93, %98 : vector<1x32xf32>
    %100 = arith.truncf %99 : vector<1x32xf32> to vector<1x32xbf16>
    %c3_i32 = arith.constant 3 : i32
    %101 = vector.broadcast %c3_i32 : i32 to vector<8x32xi32>
    %102 = arith.cmpi eq, %18, %101 : vector<8x32xi32>
    %103 = vector.shape_cast %99 : vector<1x32xf32> to vector<1x32xf32>
    %104 = vector.broadcast %103 : vector<1x32xf32> to vector<8x32xf32>
    %105 = arith.select %102, %104, %84 : vector<8x32xi1>, vector<8x32xf32>
    %106 = vector.extract_strided_slice %6 {offsets = [4, 0], sizes = [1, 128], strides = [1, 1]} : vector<8x128xf32> to vector<1x128xf32>
    %cst_18 = arith.constant dense<0.000000e+00> : vector<1x128xf32>
    %107 = tpu.matmul %100, %1, %cst_18 {dimension_numbers = #tpu.dot_dimension_numbers<[1], [0], [0], [1], [0, 0, 1, 1], [], []>} : vector<1x32xbf16>, vector<32x128xbf16>, vector<1x128xf32> -> vector<1x128xf32>
    %108 = arith.addf %106, %107 : vector<1x128xf32>
    %109 = math.tanh %108 : vector<1x128xf32>
    %110 = arith.mulf %109, %12 : vector<1x128xf32>
    %111 = arith.addf %110, %17 : vector<1x128xf32>
    %112 = vector.extract_strided_slice %111 {offsets = [0, 0], sizes = [1, 32], strides = [1, 1]} : vector<1x128xf32> to vector<1x32xf32>
    %113 = vector.extract_strided_slice %111 {offsets = [0, 32], sizes = [1, 32], strides = [1, 1]} : vector<1x128xf32> to vector<1x32xf32>
    %114 = vector.extract_strided_slice %111 {offsets = [0, 64], sizes = [1, 32], strides = [1, 1]} : vector<1x128xf32> to vector<1x32xf32>
    %115 = vector.extract_strided_slice %111 {offsets = [0, 96], sizes = [1, 32], strides = [1, 1]} : vector<1x128xf32> to vector<1x32xf32>
    %116 = arith.mulf %113, %97 : vector<1x32xf32>
    %117 = arith.mulf %112, %115 : vector<1x32xf32>
    %118 = arith.addf %116, %117 : vector<1x32xf32>
    %119 = math.tanh %118 : vector<1x32xf32>
    %120 = arith.mulf %114, %119 : vector<1x32xf32>
    %121 = arith.truncf %120 : vector<1x32xf32> to vector<1x32xbf16>
    %c4_i32 = arith.constant 4 : i32
    %122 = vector.broadcast %c4_i32 : i32 to vector<8x32xi32>
    %123 = arith.cmpi eq, %18, %122 : vector<8x32xi32>
    %124 = vector.shape_cast %120 : vector<1x32xf32> to vector<1x32xf32>
    %125 = vector.broadcast %124 : vector<1x32xf32> to vector<8x32xf32>
    %126 = arith.select %123, %125, %105 : vector<8x32xi1>, vector<8x32xf32>
    %127 = vector.extract_strided_slice %6 {offsets = [5, 0], sizes = [1, 128], strides = [1, 1]} : vector<8x128xf32> to vector<1x128xf32>
    %cst_19 = arith.constant dense<0.000000e+00> : vector<1x128xf32>
    %128 = tpu.matmul %121, %1, %cst_19 {dimension_numbers = #tpu.dot_dimension_numbers<[1], [0], [0], [1], [0, 0, 1, 1], [], []>} : vector<1x32xbf16>, vector<32x128xbf16>, vector<1x128xf32> -> vector<1x128xf32>
    %129 = arith.addf %127, %128 : vector<1x128xf32>
    %130 = math.tanh %129 : vector<1x128xf32>
    %131 = arith.mulf %130, %12 : vector<1x128xf32>
    %132 = arith.addf %131, %17 : vector<1x128xf32>
    %133 = vector.extract_strided_slice %132 {offsets = [0, 0], sizes = [1, 32], strides = [1, 1]} : vector<1x128xf32> to vector<1x32xf32>
    %134 = vector.extract_strided_slice %132 {offsets = [0, 32], sizes = [1, 32], strides = [1, 1]} : vector<1x128xf32> to vector<1x32xf32>
    %135 = vector.extract_strided_slice %132 {offsets = [0, 64], sizes = [1, 32], strides = [1, 1]} : vector<1x128xf32> to vector<1x32xf32>
    %136 = vector.extract_strided_slice %132 {offsets = [0, 96], sizes = [1, 32], strides = [1, 1]} : vector<1x128xf32> to vector<1x32xf32>
    %137 = arith.mulf %134, %118 : vector<1x32xf32>
    %138 = arith.mulf %133, %136 : vector<1x32xf32>
    %139 = arith.addf %137, %138 : vector<1x32xf32>
    %140 = math.tanh %139 : vector<1x32xf32>
    %141 = arith.mulf %135, %140 : vector<1x32xf32>
    %142 = arith.truncf %141 : vector<1x32xf32> to vector<1x32xbf16>
    %c5_i32 = arith.constant 5 : i32
    %143 = vector.broadcast %c5_i32 : i32 to vector<8x32xi32>
    %144 = arith.cmpi eq, %18, %143 : vector<8x32xi32>
    %145 = vector.shape_cast %141 : vector<1x32xf32> to vector<1x32xf32>
    %146 = vector.broadcast %145 : vector<1x32xf32> to vector<8x32xf32>
    %147 = arith.select %144, %146, %126 : vector<8x32xi1>, vector<8x32xf32>
    %148 = vector.extract_strided_slice %6 {offsets = [6, 0], sizes = [1, 128], strides = [1, 1]} : vector<8x128xf32> to vector<1x128xf32>
    %cst_20 = arith.constant dense<0.000000e+00> : vector<1x128xf32>
    %149 = tpu.matmul %142, %1, %cst_20 {dimension_numbers = #tpu.dot_dimension_numbers<[1], [0], [0], [1], [0, 0, 1, 1], [], []>} : vector<1x32xbf16>, vector<32x128xbf16>, vector<1x128xf32> -> vector<1x128xf32>
    %150 = arith.addf %148, %149 : vector<1x128xf32>
    %151 = math.tanh %150 : vector<1x128xf32>
    %152 = arith.mulf %151, %12 : vector<1x128xf32>
    %153 = arith.addf %152, %17 : vector<1x128xf32>
    %154 = vector.extract_strided_slice %153 {offsets = [0, 0], sizes = [1, 32], strides = [1, 1]} : vector<1x128xf32> to vector<1x32xf32>
    %155 = vector.extract_strided_slice %153 {offsets = [0, 32], sizes = [1, 32], strides = [1, 1]} : vector<1x128xf32> to vector<1x32xf32>
    %156 = vector.extract_strided_slice %153 {offsets = [0, 64], sizes = [1, 32], strides = [1, 1]} : vector<1x128xf32> to vector<1x32xf32>
    %157 = vector.extract_strided_slice %153 {offsets = [0, 96], sizes = [1, 32], strides = [1, 1]} : vector<1x128xf32> to vector<1x32xf32>
    %158 = arith.mulf %155, %139 : vector<1x32xf32>
    %159 = arith.mulf %154, %157 : vector<1x32xf32>
    %160 = arith.addf %158, %159 : vector<1x32xf32>
    %161 = math.tanh %160 : vector<1x32xf32>
    %162 = arith.mulf %156, %161 : vector<1x32xf32>
    %163 = arith.truncf %162 : vector<1x32xf32> to vector<1x32xbf16>
    %c6_i32 = arith.constant 6 : i32
    %164 = vector.broadcast %c6_i32 : i32 to vector<8x32xi32>
    %165 = arith.cmpi eq, %18, %164 : vector<8x32xi32>
    %166 = vector.shape_cast %162 : vector<1x32xf32> to vector<1x32xf32>
    %167 = vector.broadcast %166 : vector<1x32xf32> to vector<8x32xf32>
    %168 = arith.select %165, %167, %147 : vector<8x32xi1>, vector<8x32xf32>
    %169 = vector.extract_strided_slice %6 {offsets = [7, 0], sizes = [1, 128], strides = [1, 1]} : vector<8x128xf32> to vector<1x128xf32>
    %cst_21 = arith.constant dense<0.000000e+00> : vector<1x128xf32>
    %170 = tpu.matmul %163, %1, %cst_21 {dimension_numbers = #tpu.dot_dimension_numbers<[1], [0], [0], [1], [0, 0, 1, 1], [], []>} : vector<1x32xbf16>, vector<32x128xbf16>, vector<1x128xf32> -> vector<1x128xf32>
    %171 = arith.addf %169, %170 : vector<1x128xf32>
    %172 = math.tanh %171 : vector<1x128xf32>
    %173 = arith.mulf %172, %12 : vector<1x128xf32>
    %174 = arith.addf %173, %17 : vector<1x128xf32>
    %175 = vector.extract_strided_slice %174 {offsets = [0, 0], sizes = [1, 32], strides = [1, 1]} : vector<1x128xf32> to vector<1x32xf32>
    %176 = vector.extract_strided_slice %174 {offsets = [0, 32], sizes = [1, 32], strides = [1, 1]} : vector<1x128xf32> to vector<1x32xf32>
    %177 = vector.extract_strided_slice %174 {offsets = [0, 64], sizes = [1, 32], strides = [1, 1]} : vector<1x128xf32> to vector<1x32xf32>
    %178 = vector.extract_strided_slice %174 {offsets = [0, 96], sizes = [1, 32], strides = [1, 1]} : vector<1x128xf32> to vector<1x32xf32>
    %179 = arith.mulf %176, %160 : vector<1x32xf32>
    %180 = arith.mulf %175, %178 : vector<1x32xf32>
    %181 = arith.addf %179, %180 : vector<1x32xf32>
    %182 = math.tanh %181 : vector<1x32xf32>
    %183 = arith.mulf %177, %182 : vector<1x32xf32>
    %c7_i32 = arith.constant 7 : i32
    %184 = vector.broadcast %c7_i32 : i32 to vector<8x32xi32>
    %185 = arith.cmpi eq, %18, %184 : vector<8x32xi32>
    %186 = vector.shape_cast %183 : vector<1x32xf32> to vector<1x32xf32>
    %187 = vector.broadcast %186 : vector<1x32xf32> to vector<8x32xf32>
    %188 = arith.select %185, %187, %168 : vector<8x32xi1>, vector<8x32xf32>
    %189 = arith.truncf %188 : vector<8x32xf32> to vector<8x32xbf16>
    %cst_22 = arith.constant dense<0.000000e+00> : vector<8x128xf32>
    %190 = tpu.matmul %189, %2, %cst_22 {dimension_numbers = #tpu.dot_dimension_numbers<[1], [0], [0], [1], [0, 0, 1, 1], [], []>} : vector<8x32xbf16>, vector<32x128xbf16>, vector<8x128xf32> -> vector<8x128xf32>
    %191 = vector.broadcast %4 : vector<1x128xf32> to vector<8x128xf32>
    %192 = arith.addf %190, %191 : vector<8x128xf32>
    %193 = tpu.iota {dimensions = array<i32: 1>} : vector<8x128xi32>
    %c4_i32_23 = arith.constant 4 : i32
    %194 = vector.broadcast %c4_i32_23 : i32 to vector<8x128xi32>
    %195 = arith.cmpi slt, %193, %194 : vector<8x128xi32>
    %196 = arith.negf %192 : vector<8x128xf32>
    %197 = math.exp %196 : vector<8x128xf32>
    %cst_24 = arith.constant 1.000000e+00 : f32
    %198 = vector.broadcast %cst_24 : f32 to vector<8x128xf32>
    %199 = arith.addf %198, %197 : vector<8x128xf32>
    %200 = arith.divf %198, %199 : vector<8x128xf32>
    %201 = arith.select %195, %200, %192 : vector<8x128xi1>, vector<8x128xf32>
    %c0_25 = arith.constant 0 : index
    %c0_26 = arith.constant 0 : index
    %202 = vector.load %arg2[%c0_25, %c0_26] : memref<8x128xf32, #tpu.memory_space<vmem>>, vector<8x128xf32>
    tpu.vector_store %arg2[%c0_25, %c0_26], %201 {strides = array<i32>} : memref<8x128xf32, #tpu.memory_space<vmem>>, vector<8x128xf32>,
    return
  }
}

</mosaic_0001>

<llo_original>
// kernel: tpu_custom_call.1
$region0: #{tpu_custom_call.1}
  #allocation0 [shape = 'u32[]', space=smem, size = 0x4, offset = 0x4, fixed_abs, tag = 'smem constant byte address 0x4 - core index']
  #allocation1 [shape = 'u32[144,128]{1,0:T(1,128)}', space=vmem, size = 0x12000, scoped, tag = 'internal scratch']
  %s0 = inlined_call_operand.hbm [shape: bf16[8,88], index: 0, kind: input, shape index: {}]
  %s1 = inlined_call_operand.hbm [shape: bf16[160,128], index: 1, kind: input, shape index: {}]
  %s2 = inlined_call_operand.hbm [shape: f32[8,128], index: 2, kind: output, shape index: {}]
  %s3 = sld [smem:[#allocation0]]
  $region26: #{tpu_custom_call.1} parent=0
    _
  %s5 = ssub.s32 1, %s3
  %s6 = scalar_select 0, %s5, %s3
  $region1: #{tpu_custom_call.1} parent=0
    #allocation2 [shape = 'u8[2048]{0}', space=vmem, size = 0x800, scoped, tag = 'input window, operand 0, single buffered']
    #allocation3 [shape = 's32[1]{0}', space=sflag, size = 0x4, scoped, tag = 'scoped memory for tpu_custom_call.1']
    #allocation4 [shape = 's32[1]{0}', space=sflag, size = 0x4, scoped, tag = 'scoped memory for tpu_custom_call.1']
    #allocation5 [shape = 'u8[40960]{0}', space=vmem, size = 0xa000, scoped, tag = 'input window, operand 1, single buffered']
    #allocation6 [shape = 's32[1]{0}', space=sflag, size = 0x4, scoped, tag = 'scoped memory for tpu_custom_call.1']
    #allocation7 [shape = 'u8[4096]{0}', space=vmem, size = 0x1000, scoped, tag = 'output window, operand 0, single buffered']
    %7 = vsyncpa [#allocation3], 0
    %8 = vsyncpa [#allocation6], 0
    %9 = vsyncpa [#allocation4], 0
    // Predicated region
    $region2: #{tpu_custom_call.1} parent=1 // pred_check
      _
    $region3: #{tpu_custom_call.1} parent=1 // pred_check_branch
      %11 = sbr.rel (0) target = $region5
    $region4: #{tpu_custom_call.1} parent=1 // pred_region
      %s13 = ssub.s32 64, 64
      %14 = vsyncadd [#allocation3], %s13
      %s16 = sshll.u32 [#allocation2], 4
      %s17 = int_to_ptr.vmem [resolvable:$true] %s16
      %19 = dma.hbm_to_vmem [thread:$0]  %s0, 64, %s17, [#allocation3]
    $region5: #{tpu_custom_call.1} parent=1 // pred_fallthru
      _
    // Predicated region
    $region6: #{tpu_custom_call.1} parent=1 // pred_check
      _
    $region7: #{tpu_custom_call.1} parent=1 // pred_check_branch
      %21 = sbr.rel (0) target = $region9
    $region8: #{tpu_custom_call.1} parent=1 // pred_region
      %s23 = ssub.s32 1280, 1280
      %24 = vsyncadd [#allocation6], %s23
      %s25 = sshll.u32 [#allocation5], 4
      %s26 = int_to_ptr.vmem [resolvable:$true] %s25
      %31 = dma.hbm_to_vmem [thread:$0]  %s1, 1280, %s26, [#allocation6], 64, 64, 4
    $region9: #{tpu_custom_call.1} parent=1 // pred_fallthru
      _
    // Predicated region
    $region10: #{tpu_custom_call.1} parent=1 // pred_check
      _
    $region11: #{tpu_custom_call.1} parent=1 // pred_check_branch
      %33 = sbr.rel (0) target = $region13
    $region12: #{tpu_custom_call.1} parent=1 // pred_region
      %34 = dma.done [#allocation3], 64
    $region13: #{tpu_custom_call.1} parent=1 // pred_fallthru
      _
    // Predicated region
    $region14: #{tpu_custom_call.1} parent=1 // pred_check
      _
    $region15: #{tpu_custom_call.1} parent=1 // pred_check_branch
      %36 = sbr.rel (0) target = $region17
    $region16: #{tpu_custom_call.1} parent=1 // pred_region
      %37 = dma.done [#allocation6], 1280
    $region17: #{tpu_custom_call.1} parent=1 // pred_fallthru
      _
    %v39 = vld [vmem:[#allocation5] sm:$0xf]
    %v40 = vld [vmem:[#allocation5 + $0x4] sm:$0xf]
    %v41 = vld [vmem:[#allocation5 + $0x8] sm:$0xf]
    %v42 = vld [vmem:[#allocation5 + $0xc] sm:$0xf]
    %v43 = vld [vmem:[#allocation5 + $0x10] sm:$0xf]
    %v44 = vld [vmem:[#allocation5 + $0x14] sm:$0xf]
    %v45 = vld [vmem:[#allocation5 + $0x18] sm:$0xf]
    %v46 = vld [vmem:[#allocation5 + $0x1c] sm:$0xf]
    %v47 = vld [vmem:[#allocation5 + $0x20] sm:$0xf]
    %v48 = vld [vmem:[#allocation5 + $0x24] sm:$0xf]
    %v49 = vld [vmem:[#allocation5 + $0x28] sm:$0xf]
    %v50 = vld [vmem:[#allocation5 + $0x2c] sm:$0xf]
    %v51 = vld [vmem:[#allocation5 + $0x30] sm:$0xf]
    %v52 = vld [vmem:[#allocation5 + $0x34] sm:$0xf]
    %v53 = vld [vmem:[#allocation5 + $0x38] sm:$0xf]
    %v54 = vld [vmem:[#allocation5 + $0x3c] sm:$0xf]
    %v55 = vld [vmem:[#allocation5 + $0x40] sm:$0xf]
    %v56 = vld [vmem:[#allocation5 + $0x44] sm:$0xf]
    %v57 = vld [vmem:[#allocation5 + $0x48] sm:$0xf]
    %v58 = vld [vmem:[#allocation5 + $0x4c] sm:$0x1]
    %v59 = vunpack.c.l.bf16 %v58
    %v60 = vld [vmem:[#allocation2] sm:$0xf]
    %v72 = vunpack.c.l.b16 %v39
    %v73 = vunpack.c.l.b16 %v40
    %v74 = vunpack.c.l.b16 %v41
    %v75 = vunpack.c.l.b16 %v42
    %v76 = vunpack.c.l.b16 %v43
    %v77 = vunpack.c.l.b16 %v44
    %v78 = vunpack.c.l.b16 %v45
    %v79 = vunpack.c.l.b16 %v46
    %v80 = vunpack.c.l.b16 %v47
    %v81 = vunpack.c.l.b16 %v48
    %v82 = vunpack.c.l.b16 %v49
    %v83 = vpack.c.b16 %v73, %v72
    %v84 = vpack.c.b16 %v75, %v74
    %v85 = vpack.c.b16 %v77, %v76
    %v86 = vpack.c.b16 %v79, %v78
    %v87 = vpack.c.b16 %v81, %v80
    %v88 = vpack.c.b16 %v82, %v82
    %vm94 = vcmask 719872
    %v96 = vsel %vm94, %v60, 0
    %vm98 = vcmask 1043456
    %v100 = vsel %vm98, %v88, 0
    %102 = vmatprep.subr.bf16.mxu0 0
    %103 = vmatpush1.bf16.msra.mxu0 %v83
    %104 = vmatprep.subr.bf16.mxu0 0
    %105 = vmatpush1.bf16.msra.mxu0 %v84
    %106 = vmatprep.subr.bf16.mxu0 0
    %107 = vmatpush1.bf16.msra.mxu0 %v85
    %108 = vmatprep.subr.bf16.mxu0 0
    %109 = vmatpush1.bf16.msra.mxu0 %v86
    %110 = vmatprep.subr.bf16.mxu0 0
    %111 = vmatpush1.bf16.msra.mxu0 %v87
    %112 = vmatprep.subr.bf16.mxu0 0
    %113 = vmatpush1.bf16.msra.mxu0 %v100
    %114 = vmatprep.subr.bf16.mxu0 0
    %115 = vmatpush1.bf16.msra.mxu0 0
    %116 = vmatprep.subr.bf16.mxu0 0
    %117 = vmatpush1.bf16.msra.mxu0 0
    %118 = vmatprep.subr.bf16.mxu0 0
    %119 = vmatpush1.bf16.msra.mxu0 0
    %120 = vmatprep.subr.bf16.mxu0 0
    %121 = vmatpush1.bf16.msra.mxu0 0
    %122 = vmatprep.subr.bf16.mxu0 0
    %123 = vmatpush1.bf16.msra.mxu0 0
    %124 = vmatprep.subr.bf16.mxu0 0
    %125 = vmatpush1.bf16.msra.mxu0 0
    %126 = vmatprep.subr.bf16.mxu0 0
    %127 = vmatpush1.bf16.msra.mxu0 0
    %128 = vmatprep.subr.bf16.mxu0 0
    %129 = vmatpush1.bf16.msra.mxu0 0
    %130 = vmatprep.subr.bf16.mxu0 0
    %131 = vmatpush1.bf16.msra.mxu0 0
    %132 = vmatprep.subr.bf16.mxu0 0
    %133 = vmatpush1.bf16.msra.mxu0 0
    %134 = vmatprep.mubr.bf16.mxu0 0
    %135 = vmatmul.mubr.bf16.gmra.mrb[0].mxu0 %v96
    %v136 = vpop.f32.mrb[0].mxu0
    %v137 = vadd.f32 0.0, %v136
    %v138 = vpop.f32.mrb[0].mxu0
    %v139 = vpop.f32.mrb[0].mxu0
    %v140 = vpop.f32.mrb[0].mxu0
    %141 = vdwg.mxu0
    %v142 = vlaneseq
    %v143 = vand.u32 %v142, 127
    %vm144 = vcmp.lt.s32.totalorder %v143, 96
    %v145 = vsel %vm144, 0.5, 1.0
    %v146 = vsel %vm144, 0.5, 0.0
    %v147 = vlaneseq
    %v148 = vshrl.u32 %v147, 7
    %v153 = vunpack.c.l.b16 %v50
    %v154 = vunpack.c.l.b16 %v51
    %v155 = vunpack.c.l.b16 %v52
    %v156 = vunpack.c.l.b16 %v53
    %v157 = vpack.c.b16 %v154, %v153
    %v158 = vpack.c.b16 %v156, %v155
    %vm161 = vcmask 261120
    %v163 = vsel %vm161, 0, 0
    %165 = vmatprep.subr.bf16.mxu0 0
    %166 = vmatpush1.bf16.msra.mxu0 %v157
    %167 = vmatprep.subr.bf16.mxu0 0
    %168 = vmatpush1.bf16.msra.mxu0 %v158
    %169 = vmatprep.subr.bf16.mxu0 0
    %170 = vmatpush1.bf16.msra.mxu0 0
    %171 = vmatprep.subr.bf16.mxu0 0
    %172 = vmatpush1.bf16.msra.mxu0 0
    %173 = vmatprep.subr.bf16.mxu0 0
    %174 = vmatpush1.bf16.msra.mxu0 0
    %175 = vmatprep.subr.bf16.mxu0 0
    %176 = vmatpush1.bf16.msra.mxu0 0
    %177 = vmatprep.subr.bf16.mxu0 0
    %178 = vmatpush1.bf16.msra.mxu0 0
    %179 = vmatprep.subr.bf16.mxu0 0
    %180 = vmatpush1.bf16.msra.mxu0 0
    %181 = vmatprep.subr.bf16.mxu0 0
    %182 = vmatpush1.bf16.msra.mxu0 0
    %183 = vmatprep.subr.bf16.mxu0 0
    %184 = vmatpush1.bf16.msra.mxu0 0
    %185 = vmatprep.subr.bf16.mxu0 0
    %186 = vmatpush1.bf16.msra.mxu0 0
    %187 = vmatprep.subr.bf16.mxu0 0
    %188 = vmatpush1.bf16.msra.mxu0 0
    %189 = vmatprep.subr.bf16.mxu0 0
    %190 = vmatpush1.bf16.msra.mxu0 0
    %191 = vmatprep.subr.bf16.mxu0 0
    %192 = vmatpush1.bf16.msra.mxu0 0
    %193 = vmatprep.subr.bf16.mxu0 0
    %194 = vmatpush1.bf16.msra.mxu0 0
    %195 = vmatprep.subr.bf16.mxu0 0
    %196 = vmatpush1.bf16.msra.mxu0 0
    %197 = vmatprep.mubr.bf16.mxu0 0
    %198 = vmatmul.mubr.bf16.gmra.mrb[0].mxu0 %v163
    %v199 = vpop.f32.mrb[0].mxu0
    %v200 = vadd.f32 0.0, %v199
    %v201 = vpop.f32.mrb[0].mxu0
    %v202 = vpop.f32.mrb[0].mxu0
    %v203 = vpop.f32.mrb[0].mxu0
    %204 = vdwg.mxu0
    %v205 = vadd.f32 %v137, %v200
    %v206 = vtanh.pop %v205
    %v207 = vmul.f32 %v206, %v145
    %v208 = vadd.f32 %v207, %v146
    %v209 = vmul.f32 %v208, 0.0
    %211 = vrot.lane.b32.xlu0 %v208, 32
    %v212 = vpop.permute.xlu0 %211
    %v214 = vmul.f32 %v208, %v212
    %216 = vrot.lane.b32.xlu0 %v214, 32
    %v217 = vpop.permute.xlu0 %216
    %v219 = vadd.f32 %v209, %v217
    %v220 = vtanh.pop %v219
    %222 = vrot.lane.b32.xlu0 %v220, 32
    %v223 = vpop.permute.xlu0 %222
    %v225 = vmul.f32 %v208, %v223
    %v226 = vpack.c.bf16 %v225, %v225
    %vm227 = vcmp.eq.s32.totalorder %v148, 0
    %v228 = vlaneseq
    %v229 = vshrl.u32 %v228, 7
    %v230 = vsub.s32 0, %v229
    %v231 = vrot.slane %v225, %v230
    %v232 = vsel %vm227, %v231, 0.0
    %234 = vrot.lane.b32.xlu0 %v226, 64
    %v235 = vpop.permute.xlu0 %234
    %v237 = vsel %vm161, %v235, 0
    %239 = vmatprep.subr.bf16.mxu0 0
    %240 = vmatpush1.bf16.msra.mxu0 %v157
    %241 = vmatprep.subr.bf16.mxu0 0
    %242 = vmatpush1.bf16.msra.mxu0 %v158
    %243 = vmatprep.subr.bf16.mxu0 0
    %244 = vmatpush1.bf16.msra.mxu0 0
    %245 = vmatprep.subr.bf16.mxu0 0
    %246 = vmatpush1.bf16.msra.mxu0 0
    %247 = vmatprep.subr.bf16.mxu0 0
    %248 = vmatpush1.bf16.msra.mxu0 0
    %249 = vmatprep.subr.bf16.mxu0 0
    %250 = vmatpush1.bf16.msra.mxu0 0
    %251 = vmatprep.subr.bf16.mxu0 0
    %252 = vmatpush1.bf16.msra.mxu0 0
    %253 = vmatprep.subr.bf16.mxu0 0
    %254 = vmatpush1.bf16.msra.mxu0 0
    %255 = vmatprep.subr.bf16.mxu0 0
    %256 = vmatpush1.bf16.msra.mxu0 0
    %257 = vmatprep.subr.bf16.mxu0 0
    %258 = vmatpush1.bf16.msra.mxu0 0
    %259 = vmatprep.subr.bf16.mxu0 0
    %260 = vmatpush1.bf16.msra.mxu0 0
    %261 = vmatprep.subr.bf16.mxu0 0
    %262 = vmatpush1.bf16.msra.mxu0 0
    %263 = vmatprep.subr.bf16.mxu0 0
    %264 = vmatpush1.bf16.msra.mxu0 0
    %265 = vmatprep.subr.bf16.mxu0 0
    %266 = vmatpush1.bf16.msra.mxu0 0
    %267 = vmatprep.subr.bf16.mxu0 0
    %268 = vmatpush1.bf16.msra.mxu0 0
    %269 = vmatprep.subr.bf16.mxu0 0
    %270 = vmatpush1.bf16.msra.mxu0 0
    %271 = vmatprep.mubr.bf16.mxu0 0
    %272 = vmatmul.mubr.bf16.gmra.mrb[0].mxu0 %v237
    %v273 = vpop.f32.mrb[0].mxu0
    %v274 = vadd.f32 0.0, %v273
    %v275 = vpop.f32.mrb[0].mxu0
    %v276 = vpop.f32.mrb[0].mxu0
    %v277 = vpop.f32.mrb[0].mxu0
    %278 = vdwg.mxu0
    %v280 = vrot.slane %v274, 7
    %v282 = vadd.f32 %v137, %v280
    %v283 = vtanh.pop %v282
    %v284 = vmul.f32 %v283, %v145
    %v285 = vadd.f32 %v284, %v146
    %v287 = vrot.slane %v219, 7
    %v289 = vmul.f32 %v285, %v287
    %291 = vrot.lane.b32.xlu0 %v285, 32
    %v292 = vpop.permute.xlu0 %291
    %v294 = vmul.f32 %v285, %v292
    %296 = vrot.lane.b32.xlu0 %v294, 32
    %v297 = vpop.permute.xlu0 %296
    %v299 = vadd.f32 %v289, %v297
    %v300 = vtanh.pop %v299
    %302 = vrot.lane.b32.xlu0 %v300, 32
    %v303 = vpop.permute.xlu0 %302
    %v305 = vmul.f32 %v285, %v303
    %v306 = vpack.c.bf16 %v305, %v305
    %vm307 = vcmp.eq.s32.totalorder %v148, 1
    %v308 = vlaneseq
    %v309 = vshrl.u32 %v308, 7
    %v310 = vsub.s32 1, %v309
    %v311 = vrot.slane %v305, %v310
    %v312 = vsel %vm307, %v311, %v232
    %v314 = vshrl.u32 %v306, 16
    %316 = vrot.lane.b32.xlu0 %v314, 64
    %v317 = vpop.permute.xlu0 %316
    %v319 = vsel %vm161, %v317, 0
    %321 = vmatprep.subr.bf16.mxu0 0
    %322 = vmatpush1.bf16.msra.mxu0 %v157
    %323 = vmatprep.subr.bf16.mxu0 0
    %324 = vmatpush1.bf16.msra.mxu0 %v158
    %325 = vmatprep.subr.bf16.mxu0 0
    %326 = vmatpush1.bf16.msra.mxu0 0
    %327 = vmatprep.subr.bf16.mxu0 0
    %328 = vmatpush1.bf16.msra.mxu0 0
    %329 = vmatprep.subr.bf16.mxu0 0
    %330 = vmatpush1.bf16.msra.mxu0 0
    %331 = vmatprep.subr.bf16.mxu0 0
    %332 = vmatpush1.bf16.msra.mxu0 0
    %333 = vmatprep.subr.bf16.mxu0 0
    %334 = vmatpush1.bf16.msra.mxu0 0
    %335 = vmatprep.subr.bf16.mxu0 0
    %336 = vmatpush1.bf16.msra.mxu0 0
    %337 = vmatprep.subr.bf16.mxu0 0
    %338 = vmatpush1.bf16.msra.mxu0 0
    %339 = vmatprep.subr.bf16.mxu0 0
    %340 = vmatpush1.bf16.msra.mxu0 0
    %341 = vmatprep.subr.bf16.mxu0 0
    %342 = vmatpush1.bf16.msra.mxu0 0
    %343 = vmatprep.subr.bf16.mxu0 0
    %344 = vmatpush1.bf16.msra.mxu0 0
    %345 = vmatprep.subr.bf16.mxu0 0
    %346 = vmatpush1.bf16.msra.mxu0 0
    %347 = vmatprep.subr.bf16.mxu0 0
    %348 = vmatpush1.bf16.msra.mxu0 0
    %349 = vmatprep.subr.bf16.mxu0 0
    %350 = vmatpush1.bf16.msra.mxu0 0
    %351 = vmatprep.subr.bf16.mxu0 0
    %352 = vmatpush1.bf16.msra.mxu0 0
    %353 = vmatprep.mubr.bf16.mxu0 0
    %354 = vmatmul.mubr.bf16.gmra.mrb[0].mxu0 %v319
    %v355 = vpop.f32.mrb[0].mxu0
    %v356 = vadd.f32 0.0, %v355
    %v357 = vpop.f32.mrb[0].mxu0
    %v358 = vpop.f32.mrb[0].mxu0
    %v359 = vpop.f32.mrb[0].mxu0
    %360 = vdwg.mxu0
    %v362 = vrot.slane %v356, 6
    %v364 = vadd.f32 %v137, %v362
    %v365 = vtanh.pop %v364
    %v366 = vmul.f32 %v365, %v145
    %v367 = vadd.f32 %v366, %v146
    %v369 = vrot.slane %v299, 7
    %v371 = vmul.f32 %v367, %v369
    %373 = vrot.lane.b32.xlu0 %v367, 32
    %v374 = vpop.permute.xlu0 %373
    %v376 = vmul.f32 %v367, %v374
    %378 = vrot.lane.b32.xlu0 %v376, 32
    %v379 = vpop.permute.xlu0 %378
    %v381 = vadd.f32 %v371, %v379
    %v382 = vtanh.pop %v381
    %384 = vrot.lane.b32.xlu0 %v382, 32
    %v385 = vpop.permute.xlu0 %384
    %v387 = vmul.f32 %v367, %v385
    %v388 = vpack.c.bf16 %v387, %v387
    %vm389 = vcmp.eq.s32.totalorder %v148, 2
    %v390 = vlaneseq
    %v391 = vshrl.u32 %v390, 7
    %v392 = vsub.s32 2, %v391
    %v393 = vrot.slane %v387, %v392
    %v394 = vsel %vm389, %v393, %v312
    %v396 = vrot.slane %v388, 1
    %397 = vrot.lane.b32.xlu0 %v396, 64
    %v398 = vpop.permute.xlu0 %397
    %v400 = vsel %vm161, %v398, 0
    %402 = vmatprep.subr.bf16.mxu0 0
    %403 = vmatpush1.bf16.msra.mxu0 %v157
    %404 = vmatprep.subr.bf16.mxu0 0
    %405 = vmatpush1.bf16.msra.mxu0 %v158
    %406 = vmatprep.subr.bf16.mxu0 0
    %407 = vmatpush1.bf16.msra.mxu0 0
    %408 = vmatprep.subr.bf16.mxu0 0
    %409 = vmatpush1.bf16.msra.mxu0 0
    %410 = vmatprep.subr.bf16.mxu0 0
    %411 = vmatpush1.bf16.msra.mxu0 0
    %412 = vmatprep.subr.bf16.mxu0 0
    %413 = vmatpush1.bf16.msra.mxu0 0
    %414 = vmatprep.subr.bf16.mxu0 0
    %415 = vmatpush1.bf16.msra.mxu0 0
    %416 = vmatprep.subr.bf16.mxu0 0
    %417 = vmatpush1.bf16.msra.mxu0 0
    %418 = vmatprep.subr.bf16.mxu0 0
    %419 = vmatpush1.bf16.msra.mxu0 0
    %420 = vmatprep.subr.bf16.mxu0 0
    %421 = vmatpush1.bf16.msra.mxu0 0
    %422 = vmatprep.subr.bf16.mxu0 0
    %423 = vmatpush1.bf16.msra.mxu0 0
    %424 = vmatprep.subr.bf16.mxu0 0
    %425 = vmatpush1.bf16.msra.mxu0 0
    %426 = vmatprep.subr.bf16.mxu0 0
    %427 = vmatpush1.bf16.msra.mxu0 0
    %428 = vmatprep.subr.bf16.mxu0 0
    %429 = vmatpush1.bf16.msra.mxu0 0
    %430 = vmatprep.subr.bf16.mxu0 0
    %431 = vmatpush1.bf16.msra.mxu0 0
    %432 = vmatprep.subr.bf16.mxu0 0
    %433 = vmatpush1.bf16.msra.mxu0 0
    %434 = vmatprep.mubr.bf16.mxu0 0
    %435 = vmatmul.mubr.bf16.gmra.mrb[0].mxu0 %v400
    %v436 = vpop.f32.mrb[0].mxu0
    %v437 = vadd.f32 0.0, %v436
    %v438 = vpop.f32.mrb[0].mxu0
    %v439 = vpop.f32.mrb[0].mxu0
    %v440 = vpop.f32.mrb[0].mxu0
    %441 = vdwg.mxu0
    %v443 = vrot.slane %v437, 5
    %v445 = vadd.f32 %v137, %v443
    %v446 = vtanh.pop %v445
    %v447 = vmul.f32 %v446, %v145
    %v448 = vadd.f32 %v447, %v146
    %v450 = vrot.slane %v381, 7
    %v452 = vmul.f32 %v448, %v450
    %454 = vrot.lane.b32.xlu0 %v448, 32
    %v455 = vpop.permute.xlu0 %454
    %v457 = vmul.f32 %v448, %v455
    %459 = vrot.lane.b32.xlu0 %v457, 32
    %v460 = vpop.permute.xlu0 %459
    %v462 = vadd.f32 %v452, %v460
    %v463 = vtanh.pop %v462
    %465 = vrot.lane.b32.xlu0 %v463, 32
    %v466 = vpop.permute.xlu0 %465
    %v468 = vmul.f32 %v448, %v466
    %v469 = vpack.c.bf16 %v468, %v468
    %vm470 = vcmp.eq.s32.totalorder %v148, 3
    %v471 = vlaneseq
    %v472 = vshrl.u32 %v471, 7
    %v473 = vsub.s32 3, %v472
    %v474 = vrot.slane %v468, %v473
    %v475 = vsel %vm470, %v474, %v394
    %v477 = vshrl.u32 %v469, 16
    %v479 = vrot.slane %v477, 1
    %480 = vrot.lane.b32.xlu0 %v479, 64
    %v481 = vpop.permute.xlu0 %480
    %v483 = vsel %vm161, %v481, 0
    %485 = vmatprep.subr.bf16.mxu0 0
    %486 = vmatpush1.bf16.msra.mxu0 %v157
    %487 = vmatprep.subr.bf16.mxu0 0
    %488 = vmatpush1.bf16.msra.mxu0 %v158
    %489 = vmatprep.subr.bf16.mxu0 0
    %490 = vmatpush1.bf16.msra.mxu0 0
    %491 = vmatprep.subr.bf16.mxu0 0
    %492 = vmatpush1.bf16.msra.mxu0 0
    %493 = vmatprep.subr.bf16.mxu0 0
    %494 = vmatpush1.bf16.msra.mxu0 0
    %495 = vmatprep.subr.bf16.mxu0 0
    %496 = vmatpush1.bf16.msra.mxu0 0
    %497 = vmatprep.subr.bf16.mxu0 0
    %498 = vmatpush1.bf16.msra.mxu0 0
    %499 = vmatprep.subr.bf16.mxu0 0
    %500 = vmatpush1.bf16.msra.mxu0 0
    %501 = vmatprep.subr.bf16.mxu0 0
    %502 = vmatpush1.bf16.msra.mxu0 0
    %503 = vmatprep.subr.bf16.mxu0 0
    %504 = vmatpush1.bf16.msra.mxu0 0
    %505 = vmatprep.subr.bf16.mxu0 0
    %506 = vmatpush1.bf16.msra.mxu0 0
    %507 = vmatprep.subr.bf16.mxu0 0
    %508 = vmatpush1.bf16.msra.mxu0 0
    %509 = vmatprep.subr.bf16.mxu0 0
    %510 = vmatpush1.bf16.msra.mxu0 0
    %511 = vmatprep.subr.bf16.mxu0 0
    %512 = vmatpush1.bf16.msra.mxu0 0
    %513 = vmatprep.subr.bf16.mxu0 0
    %514 = vmatpush1.bf16.msra.mxu0 0
    %515 = vmatprep.subr.bf16.mxu0 0
    %516 = vmatpush1.bf16.msra.mxu0 0
    %517 = vmatprep.mubr.bf16.mxu0 0
    %518 = vmatmul.mubr.bf16.gmra.mrb[0].mxu0 %v483
    %v519 = vpop.f32.mrb[0].mxu0
    %v520 = vadd.f32 0.0, %v519
    %v521 = vpop.f32.mrb[0].mxu0
    %v522 = vpop.f32.mrb[0].mxu0
    %v523 = vpop.f32.mrb[0].mxu0
    %524 = vdwg.mxu0
    %v526 = vrot.slane %v520, 4
    %v528 = vadd.f32 %v137, %v526
    %v529 = vtanh.pop %v528
    %v530 = vmul.f32 %v529, %v145
    %v531 = vadd.f32 %v530, %v146
    %v533 = vrot.slane %v462, 7
    %v535 = vmul.f32 %v531, %v533
    %537 = vrot.lane.b32.xlu0 %v531, 32
    %v538 = vpop.permute.xlu0 %537
    %v540 = vmul.f32 %v531, %v538
    %542 = vrot.lane.b32.xlu0 %v540, 32
    %v543 = vpop.permute.xlu0 %542
    %v545 = vadd.f32 %v535, %v543
    %v546 = vtanh.pop %v545
    %548 = vrot.lane.b32.xlu0 %v546, 32
    %v549 = vpop.permute.xlu0 %548
    %v551 = vmul.f32 %v531, %v549
    %v552 = vpack.c.bf16 %v551, %v551
    %vm553 = vcmp.eq.s32.totalorder %v148, 4
    %v554 = vlaneseq
    %v555 = vshrl.u32 %v554, 7
    %v556 = vsub.s32 4, %v555
    %v557 = vrot.slane %v551, %v556
    %v558 = vsel %vm553, %v557, %v475
    %v560 = vrot.slane %v552, 2
    %561 = vrot.lane.b32.xlu0 %v560, 64
    %v562 = vpop.permute.xlu0 %561
    %v564 = vsel %vm161, %v562, 0
    %566 = vmatprep.subr.bf16.mxu0 0
    %567 = vmatpush1.bf16.msra.mxu0 %v157
    %568 = vmatprep.subr.bf16.mxu0 0
    %569 = vmatpush1.bf16.msra.mxu0 %v158
    %570 = vmatprep.subr.bf16.mxu0 0
    %571 = vmatpush1.bf16.msra.mxu0 0
    %572 = vmatprep.subr.bf16.mxu0 0
    %573 = vmatpush1.bf16.msra.mxu0 0
    %574 = vmatprep.subr.bf16.mxu0 0
    %575 = vmatpush1.bf16.msra.mxu0 0
    %576 = vmatprep.subr.bf16.mxu0 0
    %577 = vmatpush1.bf16.msra.mxu0 0
    %578 = vmatprep.subr.bf16.mxu0 0
    %579 = vmatpush1.bf16.msra.mxu0 0
    %580 = vmatprep.subr.bf16.mxu0 0
    %581 = vmatpush1.bf16.msra.mxu0 0
    %582 = vmatprep.subr.bf16.mxu0 0
    %583 = vmatpush1.bf16.msra.mxu0 0
    %584 = vmatprep.subr.bf16.mxu0 0
    %585 = vmatpush1.bf16.msra.mxu0 0
    %586 = vmatprep.subr.bf16.mxu0 0
    %587 = vmatpush1.bf16.msra.mxu0 0
    %588 = vmatprep.subr.bf16.mxu0 0
    %589 = vmatpush1.bf16.msra.mxu0 0
    %590 = vmatprep.subr.bf16.mxu0 0
    %591 = vmatpush1.bf16.msra.mxu0 0
    %592 = vmatprep.subr.bf16.mxu0 0
    %593 = vmatpush1.bf16.msra.mxu0 0
    %594 = vmatprep.subr.bf16.mxu0 0
    %595 = vmatpush1.bf16.msra.mxu0 0
    %596 = vmatprep.subr.bf16.mxu0 0
    %597 = vmatpush1.bf16.msra.mxu0 0
    %598 = vmatprep.mubr.bf16.mxu0 0
    %599 = vmatmul.mubr.bf16.gmra.mrb[0].mxu0 %v564
    %v600 = vpop.f32.mrb[0].mxu0
    %v601 = vadd.f32 0.0, %v600
    %v602 = vpop.f32.mrb[0].mxu0
    %v603 = vpop.f32.mrb[0].mxu0
    %v604 = vpop.f32.mrb[0].mxu0
    %605 = vdwg.mxu0
    %v607 = vrot.slane %v601, 3
    %v609 = vadd.f32 %v137, %v607
    %v610 = vtanh.pop %v609
    %v611 = vmul.f32 %v610, %v145
    %v612 = vadd.f32 %v611, %v146
    %v614 = vrot.slane %v545, 7
    %v616 = vmul.f32 %v612, %v614
    %618 = vrot.lane.b32.xlu0 %v612, 32
    %v619 = vpop.permute.xlu0 %618
    %v621 = vmul.f32 %v612, %v619
    %623 = vrot.lane.b32.xlu0 %v621, 32
    %v624 = vpop.permute.xlu0 %623
    %v626 = vadd.f32 %v616, %v624
    %v627 = vtanh.pop %v626
    %629 = vrot.lane.b32.xlu0 %v627, 32
    %v630 = vpop.permute.xlu0 %629
    %v632 = vmul.f32 %v612, %v630
    %v633 = vpack.c.bf16 %v632, %v632
    %vm634 = vcmp.eq.s32.totalorder %v148, 5
    %v635 = vlaneseq
    %v636 = vshrl.u32 %v635, 7
    %v637 = vsub.s32 5, %v636
    %v638 = vrot.slane %v632, %v637
    %v639 = vsel %vm634, %v638, %v558
    %v641 = vshrl.u32 %v633, 16
    %v643 = vrot.slane %v641, 2
    %644 = vrot.lane.b32.xlu0 %v643, 64
    %v645 = vpop.permute.xlu0 %644
    %v647 = vsel %vm161, %v645, 0
    %649 = vmatprep.subr.bf16.mxu0 0
    %650 = vmatpush1.bf16.msra.mxu0 %v157
    %651 = vmatprep.subr.bf16.mxu0 0
    %652 = vmatpush1.bf16.msra.mxu0 %v158
    %653 = vmatprep.subr.bf16.mxu0 0
    %654 = vmatpush1.bf16.msra.mxu0 0
    %655 = vmatprep.subr.bf16.mxu0 0
    %656 = vmatpush1.bf16.msra.mxu0 0
    %657 = vmatprep.subr.bf16.mxu0 0
    %658 = vmatpush1.bf16.msra.mxu0 0
    %659 = vmatprep.subr.bf16.mxu0 0
    %660 = vmatpush1.bf16.msra.mxu0 0
    %661 = vmatprep.subr.bf16.mxu0 0
    %662 = vmatpush1.bf16.msra.mxu0 0
    %663 = vmatprep.subr.bf16.mxu0 0
    %664 = vmatpush1.bf16.msra.mxu0 0
    %665 = vmatprep.subr.bf16.mxu0 0
    %666 = vmatpush1.bf16.msra.mxu0 0
    %667 = vmatprep.subr.bf16.mxu0 0
    %668 = vmatpush1.bf16.msra.mxu0 0
    %669 = vmatprep.subr.bf16.mxu0 0
    %670 = vmatpush1.bf16.msra.mxu0 0
    %671 = vmatprep.subr.bf16.mxu0 0
    %672 = vmatpush1.bf16.msra.mxu0 0
    %673 = vmatprep.subr.bf16.mxu0 0
    %674 = vmatpush1.bf16.msra.mxu0 0
    %675 = vmatprep.subr.bf16.mxu0 0
    %676 = vmatpush1.bf16.msra.mxu0 0
    %677 = vmatprep.subr.bf16.mxu0 0
    %678 = vmatpush1.bf16.msra.mxu0 0
    %679 = vmatprep.subr.bf16.mxu0 0
    %680 = vmatpush1.bf16.msra.mxu0 0
    %681 = vmatprep.mubr.bf16.mxu0 0
    %682 = vmatmul.mubr.bf16.gmra.mrb[0].mxu0 %v647
    %v683 = vpop.f32.mrb[0].mxu0
    %v684 = vadd.f32 0.0, %v683
    %v685 = vpop.f32.mrb[0].mxu0
    %v686 = vpop.f32.mrb[0].mxu0
    %v687 = vpop.f32.mrb[0].mxu0
    %688 = vdwg.mxu0
    %v690 = vrot.slane %v684, 2
    %v692 = vadd.f32 %v137, %v690
    %v693 = vtanh.pop %v692
    %v694 = vmul.f32 %v693, %v145
    %v695 = vadd.f32 %v694, %v146
    %v697 = vrot.slane %v626, 7
    %v699 = vmul.f32 %v695, %v697
    %701 = vrot.lane.b32.xlu0 %v695, 32
    %v702 = vpop.permute.xlu0 %701
    %v704 = vmul.f32 %v695, %v702
    %706 = vrot.lane.b32.xlu0 %v704, 32
    %v707 = vpop.permute.xlu0 %706
    %v709 = vadd.f32 %v699, %v707
    %v710 = vtanh.pop %v709
    %712 = vrot.lane.b32.xlu0 %v710, 32
    %v713 = vpop.permute.xlu0 %712
    %v715 = vmul.f32 %v695, %v713
    %v716 = vpack.c.bf16 %v715, %v715
    %vm717 = vcmp.eq.s32.totalorder %v148, 6
    %v718 = vlaneseq
    %v719 = vshrl.u32 %v718, 7
    %v720 = vsub.s32 6, %v719
    %v721 = vrot.slane %v715, %v720
    %v722 = vsel %vm717, %v721, %v639
    %v724 = vrot.slane %v716, 3
    %725 = vrot.lane.b32.xlu0 %v724, 64
    %v726 = vpop.permute.xlu0 %725
    %v728 = vsel %vm161, %v726, 0
    %730 = vmatprep.subr.bf16.mxu0 0
    %731 = vmatpush1.bf16.msra.mxu0 %v157
    %732 = vmatprep.subr.bf16.mxu0 0
    %733 = vmatpush1.bf16.msra.mxu0 %v158
    %734 = vmatprep.subr.bf16.mxu0 0
    %735 = vmatpush1.bf16.msra.mxu0 0
    %736 = vmatprep.subr.bf16.mxu0 0
    %737 = vmatpush1.bf16.msra.mxu0 0
    %738 = vmatprep.subr.bf16.mxu0 0
    %739 = vmatpush1.bf16.msra.mxu0 0
    %740 = vmatprep.subr.bf16.mxu0 0
    %741 = vmatpush1.bf16.msra.mxu0 0
    %742 = vmatprep.subr.bf16.mxu0 0
    %743 = vmatpush1.bf16.msra.mxu0 0
    %744 = vmatprep.subr.bf16.mxu0 0
    %745 = vmatpush1.bf16.msra.mxu0 0
    %746 = vmatprep.subr.bf16.mxu0 0
    %747 = vmatpush1.bf16.msra.mxu0 0
    %748 = vmatprep.subr.bf16.mxu0 0
    %749 = vmatpush1.bf16.msra.mxu0 0
    %750 = vmatprep.subr.bf16.mxu0 0
    %751 = vmatpush1.bf16.msra.mxu0 0
    %752 = vmatprep.subr.bf16.mxu0 0
    %753 = vmatpush1.bf16.msra.mxu0 0
    %754 = vmatprep.subr.bf16.mxu0 0
    %755 = vmatpush1.bf16.msra.mxu0 0
    %756 = vmatprep.subr.bf16.mxu0 0
    %757 = vmatpush1.bf16.msra.mxu0 0
    %758 = vmatprep.subr.bf16.mxu0 0
    %759 = vmatpush1.bf16.msra.mxu0 0
    %760 = vmatprep.subr.bf16.mxu0 0
    %761 = vmatpush1.bf16.msra.mxu0 0
    %762 = vmatprep.mubr.bf16.mxu0 0
    %763 = vmatmul.mubr.bf16.gmra.mrb[0].mxu0 %v728
    %v764 = vpop.f32.mrb[0].mxu0
    %v765 = vadd.f32 0.0, %v764
    %v766 = vpop.f32.mrb[0].mxu0
    %v767 = vpop.f32.mrb[0].mxu0
    %v768 = vpop.f32.mrb[0].mxu0
    %769 = vdwg.mxu0
    %v771 = vrot.slane %v765, 1
    %v773 = vadd.f32 %v137, %v771
    %v774 = vtanh.pop %v773
    %v775 = vmul.f32 %v774, %v145
    %v776 = vadd.f32 %v775, %v146
    %v778 = vrot.slane %v709, 7
    %v780 = vmul.f32 %v776, %v778
    %782 = vrot.lane.b32.xlu0 %v776, 32
    %v783 = vpop.permute.xlu0 %782
    %v785 = vmul.f32 %v776, %v783
    %787 = vrot.lane.b32.xlu0 %v785, 32
    %v788 = vpop.permute.xlu0 %787
    %v790 = vadd.f32 %v780, %v788
    %v791 = vtanh.pop %v790
    %793 = vrot.lane.b32.xlu0 %v791, 32
    %v794 = vpop.permute.xlu0 %793
    %v796 = vmul.f32 %v776, %v794
    %vm797 = vcmp.eq.s32.totalorder %v148, 7
    %v798 = vlaneseq
    %v799 = vshrl.u32 %v798, 7
    %v800 = vsub.s32 7, %v799
    %v801 = vrot.slane %v796, %v800
    %v802 = vsel %vm797, %v801, %v722
    %v803 = vpack.c.bf16 %v802, %v802
    %v804 = vlaneseq
    %v805 = vshrl.u32 %v804, 7
    %v806 = vsub.s32 0, %v805
    %v807 = vrot.slane %v59, %v806
    %809 = vrot.lane.b32.xlu0 %v803, 64
    %v810 = vpop.permute.xlu0 %809
    %v815 = vunpack.c.l.b16 %v54
    %v816 = vunpack.c.l.b16 %v55
    %v817 = vunpack.c.l.b16 %v56
    %v818 = vunpack.c.l.b16 %v57
    %v819 = vpack.c.b16 %v816, %v815
    %v820 = vpack.c.b16 %v818, %v817
    %v824 = vsel %vm161, %v810, 0
    %826 = vmatprep.subr.bf16.mxu0 0
    %827 = vmatpush1.bf16.msra.mxu0 %v819
    %828 = vmatprep.subr.bf16.mxu0 0
    %829 = vmatpush1.bf16.msra.mxu0 %v820
    %830 = vmatprep.subr.bf16.mxu0 0
    %831 = vmatpush1.bf16.msra.mxu0 0
    %832 = vmatprep.subr.bf16.mxu0 0
    %833 = vmatpush1.bf16.msra.mxu0 0
    %834 = vmatprep.subr.bf16.mxu0 0
    %835 = vmatpush1.bf16.msra.mxu0 0
    %836 = vmatprep.subr.bf16.mxu0 0
    %837 = vmatpush1.bf16.msra.mxu0 0
    %838 = vmatprep.subr.bf16.mxu0 0
    %839 = vmatpush1.bf16.msra.mxu0 0
    %840 = vmatprep.subr.bf16.mxu0 0
    %841 = vmatpush1.bf16.msra.mxu0 0
    %842 = vmatprep.subr.bf16.mxu0 0
    %843 = vmatpush1.bf16.msra.mxu0 0
    %844 = vmatprep.subr.bf16.mxu0 0
    %845 = vmatpush1.bf16.msra.mxu0 0
    %846 = vmatprep.subr.bf16.mxu0 0
    %847 = vmatpush1.bf16.msra.mxu0 0
    %848 = vmatprep.subr.bf16.mxu0 0
    %849 = vmatpush1.bf16.msra.mxu0 0
    %850 = vmatprep.subr.bf16.mxu0 0
    %851 = vmatpush1.bf16.msra.mxu0 0
    %852 = vmatprep.subr.bf16.mxu0 0
    %853 = vmatpush1.bf16.msra.mxu0 0
    %854 = vmatprep.subr.bf16.mxu0 0
    %855 = vmatpush1.bf16.msra.mxu0 0
    %856 = vmatprep.subr.bf16.mxu0 0
    %857 = vmatpush1.bf16.msra.mxu0 0
    %858 = vmatprep.mubr.bf16.mxu0 0
    %859 = vmatmul.mubr.bf16.gmra.mrb[0].mxu0 %v824
    %v860 = vpop.f32.mrb[0].mxu0
    %v861 = vadd.f32 %v807, %v860
    %v862 = vpop.f32.mrb[0].mxu0
    %v863 = vpop.f32.mrb[0].mxu0
    %v864 = vpop.f32.mrb[0].mxu0
    %865 = vdwg.mxu0
    %vm866 = vcmp.lt.s32.totalorder %v143, 4
    %v867 = vxor.u32 %v861, 2147483648
    %v868 = vmul.f32 %v867, 1.442695
    %v869 = vpow.pop %v868
    %v870 = vadd.f32 %v869, 1.0
    %v871 = vrcp.pop %v870
    %v872 = vmul.f32 1.0, %v871
    %v873 = vsel %vm866, %v872, %v861
    %874 = vst [vmem:[#allocation7] sm:$0xff] %v873
    // Predicated region
    $region18: #{tpu_custom_call.1} parent=1 // pred_check
      _
    $region19: #{tpu_custom_call.1} parent=1 // pred_check_branch
      %876 = sbr.rel (0) target = $region21
    $region20: #{tpu_custom_call.1} parent=1 // pred_region
      %s878 = ssub.s32 128, 128
      %879 = vsyncadd [#allocation4], %s878
      %s881 = sshll.u32 [#allocation7], 4
      %s882 = int_to_ptr.vmem [resolvable:$true] %s881
      %884 = dma.vmem_to_hbm [thread:$0]  %s882, 128, %s2, [#allocation4]
    $region21: #{tpu_custom_call.1} parent=1 // pred_fallthru
      _
    // Predicated region
    $region22: #{tpu_custom_call.1} parent=1 // pred_check
      _
    $region23: #{tpu_custom_call.1} parent=1 // pred_check_branch
      %886 = sbr.rel (0) target = $region25
    $region24: #{tpu_custom_call.1} parent=1 // pred_region
      %887 = dma.done [#allocation4], 128
    $region25: #{tpu_custom_call.1} parent=1 // pred_fallthru
      _
    %888 = vsyncpa [#allocation3], 1
    %889 = vsyncpa [#allocation6], 1
    %890 = vsyncpa [#allocation4], 1

</llo_original>
